<compile_context>
chip_gen: v5e
topology: v5e:2x2
jax: 0.10.0
libtpu: 0.0.40
codegen_flags: <defaults>
</compile_context>

<pallas_src>
import jax
import jax.numpy as jnp
from jax.experimental import pallas as pl
from jax.experimental.pallas import tpu as pltpu


def _sublane_multiple(dtype) -> int:
    """Minimum sublane multiple for full-width vreg packing of `dtype`."""
    bits = jnp.dtype(dtype).itemsize * 8
    return max(8, (8 * 32) // bits)  # f32 -> 8, bf16 -> 16, int8/fp8 -> 32


def _choose_layout(n, itemsize, sub, *, target_block_bytes=2 * 1024 * 1024,
                   max_cols=8192):
    """Pick a lane-dense 2-D slab layout and row-tile for `n` flat elements.

    Returns (rows, cols, tile_rows, padded_n) with rows * cols == padded_n >= n
    and rows % tile_rows == 0 (grid divides evenly, no ragged edge blocks).
    Padding is only introduced when `n` has no suitable factorization.
    """
    # Preferred: a lane-dense column count that divides n exactly (no padding).
    c = max_cols
    while c >= 128:
        if n % c == 0:
            rows = n // c
            max_tr = max(sub, (target_block_bytes // (c * itemsize)) // sub * sub)
            if rows <= max_tr:
                # Whole slab is a single block (block == full array, so the
                # (8,128) divisibility constraint does not apply).
                return rows, c, rows, n
            if rows % sub == 0:
                # Largest divisor of rows that is a multiple of `sub` and fits
                # the per-block VMEM budget (worst case: sub itself).
                d = max_tr
                while d >= sub:
                    if rows % d == 0:
                        return rows, c, d, n
                    d -= sub
        c //= 2

    # Fallback: pad (single jnp.pad) to a lane-dense slab.
    cols = 1024 if n >= 1024 else 128
    max_tr = max(sub, (target_block_bytes // (cols * itemsize)) // sub * sub)
    rows_raw = pl.cdiv(n, cols)
    if rows_raw <= max_tr:
        rows = rows_raw
        tile_rows = rows            # single full-array block
    else:
        rows = pl.cdiv(rows_raw, max_tr) * max_tr
        tile_rows = max_tr
    return rows, cols, tile_rows, rows * cols


def _make_lambda_kernel(lambd):
    """Pallas kernel body applying `lambd` elementwise to the current tile."""
    def kernel(x_ref, o_ref):
        o_ref[...] = lambd(x_ref[...]).astype(o_ref.dtype)
    return kernel


class PallasLambda:
    """JAX/Pallas equivalent of torch `Lambda(lambd)` for elementwise lambdas."""

    def __init__(self, lambd):
        self.lambd = lambd
        self._kernel = _make_lambda_kernel(lambd)

    def __call__(self, x):
        orig_shape = x.shape
        n = x.size
        itemsize = jnp.dtype(x.dtype).itemsize
        sub = _sublane_multiple(x.dtype)

        rows, cols, tile_rows, padded_n = _choose_layout(n, itemsize, sub)

        # Output dtype follows the lambda (PyTorch Lambda returns lambd(x)
        # unchanged); assumes an elementwise, shape-preserving lambd.
        out_dtype = jax.eval_shape(
            self.lambd, jax.ShapeDtypeStruct((tile_rows, cols), x.dtype)
        ).dtype

        flat = x.reshape(-1)
        if padded_n != n:
            # Pad with ones (not zeros) so lambdas like 1/x or log(x) stay
            # finite in the (discarded) tail region.
            flat = jnp.pad(flat, (0, padded_n - n), constant_values=1)
        slab = flat.reshape(rows, cols)

        grid = (rows // tile_rows,)

        out = pl.pallas_call(
            self._kernel,
            out_shape=jax.ShapeDtypeStruct((rows, cols), out_dtype),
            grid_spec=pltpu.PrefetchScalarGridSpec(
                num_scalar_prefetch=0,
                grid=grid,
                in_specs=[pl.BlockSpec((tile_rows, cols), lambda i: (i, 0))],
                out_specs=pl.BlockSpec((tile_rows, cols), lambda i: (i, 0)),
            ),
            compiler_params=pltpu.CompilerParams(
                dimension_semantics=("parallel",),
            ),
        )(slab)

        if padded_n != n:
            out = out.reshape(-1)[:n]
        return out.reshape(orig_shape)


if __name__ == "__main__":
    key = jax.random.PRNGKey(0)

    # Deterministic concrete elementwise lambda for this synthetic kernel.
    lambd = lambda t: t * 0.5 + 1.0
    module = PallasLambda(lambd)

    # Primary SR-style NCHW input (single whole-array (1, 2048) block).
    x = jax.random.normal(key, (2, 4, 16, 16), dtype=jnp.float32)
    y = jax.block_until_ready(module(x))
    y_ref = lambd(x)
    assert y.shape == x.shape and y.dtype == y_ref.dtype
    assert jnp.allclose(y, y_ref, atol=1e-6), "f32 mismatch vs reference"

    k1, k2 = jax.random.split(key)

    # bf16 input with an exact lane-dense factorization (4 x 8192 slab).
    x2 = jax.random.normal(k1, (2, 4, 64, 64), dtype=jnp.bfloat16)
    y2 = jax.block_until_ready(module(x2))
    assert y2.shape == x2.shape
    assert jnp.allclose(y2.astype(jnp.float32),
                        lambd(x2).astype(jnp.float32), atol=1e-2), "bf16 mismatch"

    # Ragged element count (not a multiple of 128) -> padded single-block path.
    x3 = jax.random.normal(k2, (3, 5, 7, 11), dtype=jnp.float32)
    y3 = jax.block_until_ready(module(x3))
    assert y3.shape == x3.shape
    assert jnp.allclose(y3, lambd(x3), atol=1e-6), "ragged mismatch"

    print("KERNEL_OK")
</pallas_src>

<mosaic_0001>
module attributes {stable_mosaic.version = 11 : i64} {
  func.func @kernel(%arg0: i32, %arg1: memref<1x2048xf32, #tpu.memory_space<vmem>>, %arg2: memref<1x2048xf32, #tpu.memory_space<vmem>>) attributes {dimension_semantics = [#tpu.dimension_semantics<parallel>], iteration_bounds = array<i64: 1>, scalar_prefetch = 0 : i64, scratch_operands = 0 : i64, tpu.core_type = #tpu.core_type<tc>, window_params = [{transform_indices = @transform_0, window_bounds = array<i64: 1, 2048>}, {transform_indices = @transform_1, window_bounds = array<i64: 1, 2048>}]} {
    %c0 = arith.constant 0 : index
    %c0_0 = arith.constant 0 : index
    %0 = vector.load %arg1[%c0, %c0_0] : memref<1x2048xf32, #tpu.memory_space<vmem>>, vector<1x2048xf32>
    %cst = arith.constant 5.000000e-01 : f32
    %1 = vector.broadcast %cst : f32 to vector<1x2048xf32>
    %2 = arith.mulf %0, %1 : vector<1x2048xf32>
    %cst_1 = arith.constant 1.000000e+00 : f32
    %3 = vector.broadcast %cst_1 : f32 to vector<1x2048xf32>
    %4 = arith.addf %2, %3 : vector<1x2048xf32>
    %c0_2 = arith.constant 0 : index
    %c0_3 = arith.constant 0 : index
    %5 = vector.load %arg2[%c0_2, %c0_3] : memref<1x2048xf32, #tpu.memory_space<vmem>>, vector<1x2048xf32>
    tpu.vector_store %arg2[%c0_2, %c0_3], %4 {strides = array<i32>} : memref<1x2048xf32, #tpu.memory_space<vmem>>, vector<1x2048xf32>,
    return
  }
  func.func @transform_0(%arg0: i32) -> (i32, i32) {
    %c0_i32 = arith.constant 0 : i32
    %c0_i32_0 = arith.constant 0 : i32
    return %arg0, %c0_i32 : i32, i32
  }
  func.func @transform_1(%arg0: i32) -> (i32, i32) {
    %c0_i32 = arith.constant 0 : i32
    %c0_i32_0 = arith.constant 0 : i32
    return %arg0, %c0_i32 : i32, i32
  }
}

</mosaic_0001>

<llo_original>
// kernel: tpu_custom_call.1
$region0: #{tpu_custom_call.1}
  #allocation0 [shape = 'u32[]', space=smem, size = 0x4, offset = 0x4, fixed_abs, tag = 'smem constant byte address 0x4 - core index']
  #allocation1 [shape = 'u32[72,128]{1,0:T(1,128)}', space=vmem, size = 0x9000, scoped, tag = 'internal scratch']
  %s0 = inlined_call_operand.hbm [shape: f32[1,2048], index: 0, kind: input, shape index: {}]
  %s1 = inlined_call_operand.hbm [shape: f32[1,2048], index: 1, kind: output, shape index: {}]
  %s2 = sld [smem:[#allocation0]]
  $region18: #{tpu_custom_call.1} parent=0
    _
  %s4 = ssub.s32 1, %s2
  %s5 = scalar_select 0, %s4, %s2
  $region1: #{tpu_custom_call.1} parent=0
    #allocation2 [shape = 'u8[8192]{0}', space=vmem, size = 0x2000, scoped, tag = 'input window, operand 0, single buffered']
    #allocation3 [shape = 's32[1]{0}', space=sflag, size = 0x4, scoped, tag = 'scoped memory for tpu_custom_call.1']
    #allocation4 [shape = 's32[1]{0}', space=sflag, size = 0x4, scoped, tag = 'scoped memory for tpu_custom_call.1']
    #allocation5 [shape = 'u8[8192]{0}', space=vmem, size = 0x2000, scoped, tag = 'output window, operand 0, single buffered']
    %6 = vsyncpa [#allocation3], 0
    %7 = vsyncpa [#allocation4], 0
    // Predicated region
    $region2: #{tpu_custom_call.1} parent=1 // pred_check
      _
    $region3: #{tpu_custom_call.1} parent=1 // pred_check_branch
      %9 = sbr.rel (0) target = $region5
    $region4: #{tpu_custom_call.1} parent=1 // pred_region
      %11 = vsyncadd [#allocation3], 0
      %s13 = sshll.u32 %s0, 4
      %s14 = int_to_ptr.hbm [resolvable:$true] %s13
      %s15 = sshll.u32 [#allocation2], 4
      %s16 = int_to_ptr.vmem [resolvable:$true] %s15
      %18 = dma.hbm_to_vmem [thread:$0]  %s14, 256, %s16, [#allocation3]
    $region5: #{tpu_custom_call.1} parent=1 // pred_fallthru
      _
    // Predicated region
    $region6: #{tpu_custom_call.1} parent=1 // pred_check
      _
    $region7: #{tpu_custom_call.1} parent=1 // pred_check_branch
      %20 = sbr.rel (0) target = $region9
    $region8: #{tpu_custom_call.1} parent=1 // pred_region
      %22 = dma.done [#allocation3], 256
    $region9: #{tpu_custom_call.1} parent=1 // pred_fallthru
      _
    %v23 = vld [vmem:[#allocation2] sm:$0xff]
    %v24 = vld [vmem:[#allocation2 + $0x8] sm:$0xff]
    %v25 = vmul.f32 %v23, 0.5
    %v26 = vmul.f32 %v24, 0.5
    %v27 = vadd.f32 %v25, 1.0
    %v28 = vadd.f32 %v26, 1.0
    %29 = vst [vmem:[#allocation5] sm:$0xff] %v27
    %30 = vst [vmem:[#allocation5 + $0x8] sm:$0xff] %v28
    // Predicated region
    $region10: #{tpu_custom_call.1} parent=1 // pred_check
      _
    $region11: #{tpu_custom_call.1} parent=1 // pred_check_branch
      %32 = sbr.rel (0) target = $region13
    $region12: #{tpu_custom_call.1} parent=1 // pred_region
      %34 = vsyncadd [#allocation4], 0
      %s36 = sshll.u32 [#allocation5], 4
      %s37 = int_to_ptr.vmem [resolvable:$true] %s36
      %s38 = sshll.u32 %s1, 4
      %s39 = int_to_ptr.hbm [resolvable:$true] %s38
      %41 = dma.vmem_to_hbm [thread:$0]  %s37, 256, %s39, [#allocation4]
    $region13: #{tpu_custom_call.1} parent=1 // pred_fallthru
      _
    // Predicated region
    $region14: #{tpu_custom_call.1} parent=1 // pred_check
      _
    $region15: #{tpu_custom_call.1} parent=1 // pred_check_branch
      %43 = sbr.rel (0) target = $region17
    $region16: #{tpu_custom_call.1} parent=1 // pred_region
      %45 = dma.done [#allocation4], 256
    $region17: #{tpu_custom_call.1} parent=1 // pred_fallthru
      _
    %46 = vsyncpa [#allocation3], 1
    %47 = vsyncpa [#allocation4], 1

</llo_original>
